<compile_context>
chip_gen: v7x
topology: tpu7x:2x2x1
jax: 0.10.0
libtpu: 0.0.40
codegen_flags: <defaults>
</compile_context>

<pallas_src>
import numpy as np
import jax
import jax.numpy as jnp
from jax import lax
from jax.experimental import pallas as pl
from jax.experimental.pallas import tpu as pltpu


def make_pos_enc_table(max_seq_len: int, d_word_vec: int) -> np.ndarray:
    """Deterministic sinusoidal table, identical to the PyTorch __init__."""
    pos_enc = np.array(
        [
            [pos / np.power(10000, 2.0 * (j // 2) / d_word_vec) for j in range(d_word_vec)]
            for pos in range(max_seq_len)
        ]
    )
    pos_enc[:, 0::2] = np.sin(pos_enc[:, 0::2])
    pos_enc[:, 1::2] = np.cos(pos_enc[:, 1::2])
    pad_row = np.zeros([1, d_word_vec])
    return np.concatenate([pad_row, pos_enc]).astype(np.float32)  # (max_seq_len+1, D)


def _cdiv(a: int, b: int) -> int:
    return -(-a // b)


def _pad_up(x: int, m: int) -> int:
    return _cdiv(x, m) * m


def _sublane_multiple(itemsize: int) -> int:
    # f32 -> 8 sublanes, bf16/f16 -> 16 (packed), int8 -> 32.
    return max(8, 32 // itemsize)


def _block_vmem_bytes(bb: int, tf: int, out_itemsize: int) -> int:
    """Double-buffered VMEM footprint of one grid step, with layout padding.

    enc block  (1, Tf)  f32 : padded to 8 sublanes          -> 32 * Tf  bytes / buffer
    out block  (Bb, Tf)     : Bb padded to the dtype sublane -> Bb*Tf*itemsize / buffer
    lenf block (Bb, 1)  i32 : padded to 128 lanes            -> 512 * Bb bytes / buffer
    """
    sub = _sublane_multiple(out_itemsize)
    tf_pad = _pad_up(tf, 128)
    enc = 8 * tf_pad * 4
    out = _pad_up(bb, sub) * tf_pad * out_itemsize
    lenf = _pad_up(bb, 8) * 128 * 4
    return 2 * (enc + out + lenf)  # x2: the pipeline double-buffers every block


def _choose_tiles(batch: int, flat: int, budget_bytes: int,
                  out_itemsize: int, min_grid_steps: int):
    """Pick (batch_block, flat_tile) for the flattened (B, max_len*D) output.

    Blocks are chosen so the double-buffered, layout-padded footprint stays under
    `budget_bytes`, output blocks are ~4 MiB (amortizes the ~0.35 us per-step
    pipeline overhead), Tf stays >= 512 lanes when tiled (>= 2 KiB contiguous
    writeback per row), and — when the whole problem would fit in one step —
    the grid is still split into >= `min_grid_steps` blocks so both v7x
    TensorCores receive work.
    """
    sub = _sublane_multiple(out_itemsize)

    # Whole problem fits in a single block?
    if _block_vmem_bytes(batch, flat, out_itemsize) <= budget_bytes:
        bb, tf = batch, flat
        if min_grid_steps > 1:
            if batch >= 2 * sub:
                bb = _pad_up(_cdiv(batch, 2), sub)       # split batch across TCs
            elif flat >= 2 * 512:
                tf = _pad_up(_cdiv(flat, 2), 128)        # else split flat
            # else: problem too small to split legally; one step is fine.
        return bb, tf

    # Tiled path: target ~4 MiB output blocks along the batch axis.
    flat_pad = _pad_up(flat, 128)
    bb = (4 << 20) // (out_itemsize * flat_pad)
    bb = max(sub, (bb // sub) * sub)
    if bb >= batch:
        bb = batch                                       # full dim satisfies (8,128) rule

    if _block_vmem_bytes(bb, flat, out_itemsize) <= budget_bytes:
        tf = flat
    else:
        # Largest Tf (multiple of 128, >= 512) under the corrected budget:
        #   2*(32 + Bb_pad*itemsize)*Tf + 2*Bb_pad*512 <= budget
        bb_pad = _pad_up(bb, 8)
        denom = 2 * (32 + bb_pad * out_itemsize)
        tf = (budget_bytes - 2 * bb_pad * 512) // denom
        tf = max(512, (tf // 128) * 128)
        if tf >= flat:
            tf = flat
    return bb, tf


def _pos_enc_kernel(blkmin_ref, blkmax_ref, lenf_ref, enc_ref, out_ref):
    # blkmin_ref/blkmax_ref: SMEM int32 [n_batch_blocks]  (scalar prefetch)
    #     per-batch-block min / max of len*D.
    # lenf_ref: VMEM int32 [Bb, 1]    -- len*D for the rows of this block
    # enc_ref:  VMEM f32   [1, Tf]    -- flattened enc rows 1..max_len, this flat tile
    # out_ref:  VMEM       [Bb, Tf]
    fi = pl.program_id(0)   # flat tile (outer axis): enc block reused across batch blocks
    bi = pl.program_id(1)   # batch block (inner axis)
    Bb, Tf = out_ref.shape
    flat0 = fi * Tf         # first flat index (t*D + d) covered by this tile

    blk_min = blkmin_ref[bi]
    blk_max = blkmax_ref[bi]
    all_valid = blk_min >= flat0 + Tf   # every row fully covers this tile
    all_pad = blk_max <= flat0          # every row is pure padding in this tile

    @pl.when(all_valid)
    def _():
        out_ref[...] = jnp.broadcast_to(enc_ref[...], (Bb, Tf)).astype(out_ref.dtype)

    @pl.when(all_pad)
    def _():
        out_ref[...] = jnp.zeros((Bb, Tf), out_ref.dtype)

    @pl.when(jnp.logical_not(jnp.logical_or(all_valid, all_pad)))
    def _():
        # Boundary tile: masked select.  The iota lives on the lane axis only
        # (1, Tf); the compare broadcasts it against the (Bb, 1) length column.
        flat_idx = lax.broadcasted_iota(jnp.int32, (1, Tf), 1) + flat0
        mask = flat_idx < lenf_ref[...]                   # (Bb, Tf)
        out_ref[...] = jnp.where(mask, enc_ref[...], jnp.float32(0.0)).astype(out_ref.dtype)


def pos_encoding_forward(
    input_len: jnp.ndarray,
    pos_enc_table: jnp.ndarray,
    max_len: int | None = None,
    *,
    out_dtype=jnp.float32,
    vmem_budget_bytes: int = 16 << 20,
    min_grid_steps: int = 2,
) -> jnp.ndarray:
    """input_len: int [B]; pos_enc_table: f32 [max_seq_len+1, D].

    Returns [B, max_len, D] in `out_dtype` (f32 by default, matching the PyTorch module;
    pass jnp.bfloat16 to halve writeback bytes for bf16 consumers).  Pass a static
    (bucketed) `max_len` in production to avoid the device->host sync and the recompile
    per distinct max_len implied by max_len = max(input_len).
    """
    input_len = input_len.astype(jnp.int32)
    B = input_len.shape[0]
    D = pos_enc_table.shape[1]
    if max_len is None:
        # TODO(synk): data-dependent output shape; resolved on host (not jit-traceable).
        max_len = int(jax.device_get(jnp.max(input_len)))
    flat = max_len * D
    if B == 0 or flat == 0:
        # Degenerate case (all lengths zero): empty output, nothing to launch.
        return jnp.zeros((B, max_len, D), out_dtype)

    out_itemsize = jnp.dtype(out_dtype).itemsize
    Bb, Tf = _choose_tiles(B, flat, vmem_budget_bytes, out_itemsize, min_grid_steps)
    n_bb = _cdiv(B, Bb)
    n_ft = _cdiv(flat, Tf)

    # Table rows for positions 1..max_len, flattened lane-dense.
    enc_flat = pos_enc_table[1 : max_len + 1].reshape(1, flat).astype(jnp.float32)

    # Valid-extent in flat units: row b is valid for flat indices [0, len_b * D).
    lenf = input_len * jnp.int32(D)                 # [B]
    lenf_col = lenf.reshape(B, 1)                   # VMEM column for the vector compare

    # Per-batch-block min/max of len*D (drives the all-valid / all-padding shortcuts).
    # Padding values keep the shortcuts conservative for the (discarded) edge rows.
    pad = n_bb * Bb - B
    lenf_min = jnp.min(
        jnp.pad(lenf, (0, pad), constant_values=np.iinfo(np.int32).max).reshape(n_bb, Bb),
        axis=1,
    )
    lenf_max = jnp.max(
        jnp.pad(lenf, (0, pad), constant_values=0).reshape(n_bb, Bb),
        axis=1,
    )

    # VMEM limit derived from the actual padded, double-buffered footprint plus headroom
    # for Mosaic internal scratch (safe on v7x's 64 MiB physical VMEM).
    footprint = _block_vmem_bytes(Bb, Tf, out_itemsize)
    vmem_limit = min(max(footprint + (4 << 20), 16 << 20), 128 << 20)

    # Pure HBM-bound op: tell XLA how heavy it is so surrounding ops schedule around it.
    cost = pl.CostEstimate(
        flops=0,
        transcendentals=0,
        bytes_accessed=B * flat * out_itemsize + flat * 4 + B * 4,
    )

    # Grid: flat tile OUTER, batch block INNER -> the enc block index (0, fi) is constant
    # across consecutive grid steps, so Pallas skips re-DMAing the same enc tile.
    out_flat = pl.pallas_call(
        _pos_enc_kernel,
        out_shape=jax.ShapeDtypeStruct((B, flat), out_dtype),
        grid_spec=pltpu.PrefetchScalarGridSpec(
            num_scalar_prefetch=2,
            grid=(n_ft, n_bb),
            in_specs=[
                pl.BlockSpec((Bb, 1), lambda fi, bi, mn, mx: (bi, 0)),   # len*D column
                pl.BlockSpec((1, Tf), lambda fi, bi, mn, mx: (0, fi)),   # enc flat tile
            ],
            out_specs=pl.BlockSpec((Bb, Tf), lambda fi, bi, mn, mx: (bi, fi)),
        ),
        compiler_params=pltpu.CompilerParams(
            dimension_semantics=("parallel", "parallel"),
            vmem_limit_bytes=vmem_limit,
        ),
        cost_estimate=cost,
    )(lenf_min, lenf_max, lenf_col, enc_flat)

    return out_flat.reshape(B, max_len, D)


def reference_forward(input_len: np.ndarray, pos_enc_table: np.ndarray) -> np.ndarray:
    """NumPy port of the PyTorch forward for verification."""
    max_len = int(np.max(input_len))
    input_pos = np.array(
        [list(range(1, int(l) + 1)) + [0] * (max_len - int(l)) for l in input_len],
        dtype=np.int64,
    )
    return pos_enc_table[input_pos]  # (B, max_len, D)


if __name__ == "__main__":
    max_seq_len = 16
    d_word_vec = 32
    batch = 4

    table = make_pos_enc_table(max_seq_len, d_word_vec)

    key = jax.random.PRNGKey(0)
    input_len = jax.random.randint(
        key, (batch,), minval=1, maxval=max_seq_len + 1, dtype=jnp.int32
    )

    out = pos_encoding_forward(input_len, jnp.asarray(table))
    out = jax.block_until_ready(out)

    ref = reference_forward(np.asarray(input_len), table)
    np.testing.assert_allclose(np.asarray(out), ref, rtol=1e-6, atol=1e-6)

    print("KERNEL_OK")
</pallas_src>

<mosaic_0001>
module attributes {stable_mosaic.version = 11 : i64} {
  func.func @_pos_enc_kernel(%arg0: i32, %arg1: i32, %arg2: memref<1xi32, #tpu.memory_space<smem>>, %arg3: memref<1xi32, #tpu.memory_space<smem>>, %arg4: memref<4x1xi32, #tpu.memory_space<vmem>>, %arg5: memref<1x448xf32, #tpu.memory_space<vmem>>, %arg6: memref<4x448xf32, #tpu.memory_space<vmem>>) attributes {dimension_semantics = [#tpu.dimension_semantics<parallel>, #tpu.dimension_semantics<parallel>], iteration_bounds = array<i64: 1, 1>, scalar_prefetch = 2 : i64, scratch_operands = 0 : i64, tpu.core_type = #tpu.core_type<tc>, window_params = [{transform_indices = @transform_0, window_bounds = array<i64: 4, 1>}, {transform_indices = @transform_1, window_bounds = array<i64: 1, 448>}, {transform_indices = @transform_2, window_bounds = array<i64: 4, 448>}]} {
    %c448_i32 = arith.constant 448 : i32
    %0 = arith.muli %arg0, %c448_i32 : i32
    %1 = arith.index_cast %arg1 : i32 to index
    %2 = memref.load %arg2[%1] : memref<1xi32, #tpu.memory_space<smem>>
    %3 = arith.index_cast %arg1 : i32 to index
    %4 = memref.load %arg3[%3] : memref<1xi32, #tpu.memory_space<smem>>
    %c448_i32_0 = arith.constant 448 : i32
    %5 = arith.addi %0, %c448_i32_0 : i32
    %6 = arith.cmpi sge, %2, %5 : i32
    %7 = arith.cmpi sle, %4, %0 : i32
    %8 = arith.extui %6 : i1 to i32
    %c0_i32 = arith.constant 0 : i32
    %9 = arith.cmpi ne, %8, %c0_i32 : i32
    scf.if %9 {
      %c0 = arith.constant 0 : index
      %c0_3 = arith.constant 0 : index
      %16 = vector.load %arg5[%c0, %c0_3] : memref<1x448xf32, #tpu.memory_space<vmem>>, vector<1x448xf32>
      %17 = vector.shape_cast %16 : vector<1x448xf32> to vector<1x448xf32>
      %18 = vector.broadcast %17 : vector<1x448xf32> to vector<4x448xf32>
      %c0_4 = arith.constant 0 : index
      %c0_5 = arith.constant 0 : index
      %19 = vector.load %arg6[%c0_4, %c0_5] : memref<4x448xf32, #tpu.memory_space<vmem>>, vector<4x448xf32>
      tpu.vector_store %arg6[%c0_4, %c0_5], %18 {strides = array<i32>} : memref<4x448xf32, #tpu.memory_space<vmem>>, vector<4x448xf32>,
    } else {
    }
    %10 = arith.extui %7 : i1 to i32
    %c0_i32_1 = arith.constant 0 : i32
    %11 = arith.cmpi ne, %10, %c0_i32_1 : i32
    scf.if %11 {
      %cst = arith.constant 0.000000e+00 : f32
      %16 = vector.broadcast %cst : f32 to vector<4x448xf32>
      %c0 = arith.constant 0 : index
      %c0_3 = arith.constant 0 : index
      %17 = vector.load %arg6[%c0, %c0_3] : memref<4x448xf32, #tpu.memory_space<vmem>>, vector<4x448xf32>
      tpu.vector_store %arg6[%c0, %c0_3], %16 {strides = array<i32>} : memref<4x448xf32, #tpu.memory_space<vmem>>, vector<4x448xf32>,
    } else {
    }
    %12 = arith.ori %6, %7 : i1
    %true = arith.constant true
    %13 = arith.xori %12, %true : i1
    %14 = arith.extui %13 : i1 to i32
    %c0_i32_2 = arith.constant 0 : i32
    %15 = arith.cmpi ne, %14, %c0_i32_2 : i32
    scf.if %15 {
      %16 = tpu.iota {dimensions = array<i32: 1>} : vector<1x448xi32>
      %17 = vector.broadcast %0 : i32 to vector<1x448xi32>
      %18 = arith.addi %16, %17 : vector<1x448xi32>
      %c0 = arith.constant 0 : index
      %c0_3 = arith.constant 0 : index
      %19 = vector.load %arg4[%c0, %c0_3] : memref<4x1xi32, #tpu.memory_space<vmem>>, vector<4x1xi32>
      %20 = vector.broadcast %18 : vector<1x448xi32> to vector<4x448xi32>
      %21 = vector.broadcast %19 : vector<4x1xi32> to vector<4x448xi32>
      %22 = arith.cmpi slt, %20, %21 : vector<4x448xi32>
      %c0_4 = arith.constant 0 : index
      %c0_5 = arith.constant 0 : index
      %23 = vector.load %arg5[%c0_4, %c0_5] : memref<1x448xf32, #tpu.memory_space<vmem>>, vector<1x448xf32>
      %cst = arith.constant 0.000000e+00 : f32
      %24 = vector.shape_cast %23 : vector<1x448xf32> to vector<1x448xf32>
      %25 = vector.broadcast %24 : vector<1x448xf32> to vector<4x448xf32>
      %26 = vector.broadcast %cst : f32 to vector<4x448xf32>
      %27 = arith.select %22, %25, %26 : vector<4x448xi1>, vector<4x448xf32>
      %c0_6 = arith.constant 0 : index
      %c0_7 = arith.constant 0 : index
      %28 = vector.load %arg6[%c0_6, %c0_7] : memref<4x448xf32, #tpu.memory_space<vmem>>, vector<4x448xf32>
      tpu.vector_store %arg6[%c0_6, %c0_7], %27 {strides = array<i32>} : memref<4x448xf32, #tpu.memory_space<vmem>>, vector<4x448xf32>,
    } else {
    }
    return
  }
  func.func @transform_0(%arg0: i32, %arg1: i32, %arg2: memref<1xi32, #tpu.memory_space<smem>>, %arg3: memref<1xi32, #tpu.memory_space<smem>>) -> (i32, i32) {
    %c0_i32 = arith.constant 0 : i32
    %c0_i32_0 = arith.constant 0 : i32
    return %arg1, %c0_i32 : i32, i32
  }
  func.func @transform_1(%arg0: i32, %arg1: i32, %arg2: memref<1xi32, #tpu.memory_space<smem>>, %arg3: memref<1xi32, #tpu.memory_space<smem>>) -> (i32, i32) {
    %c0_i32 = arith.constant 0 : i32
    %c0_i32_0 = arith.constant 0 : i32
    return %c0_i32, %arg0 : i32, i32
  }
  func.func @transform_2(%arg0: i32, %arg1: i32, %arg2: memref<1xi32, #tpu.memory_space<smem>>, %arg3: memref<1xi32, #tpu.memory_space<smem>>) -> (i32, i32) {
    %c0_i32 = arith.constant 0 : i32
    return %arg1, %arg0 : i32, i32
  }
}

</mosaic_0001>

<llo_original>
// kernel: tpu_custom_call.1
$region0: #{tpu_custom_call.1}
  #allocation0 [shape = 'u32[]', space=smem, size = 0x4, offset = 0x4, fixed_abs, tag = 'smem constant byte address 0x4 - core index']
  #allocation1 [shape = 'u32[144,128]{1,0:T(1,128)}', space=vmem, size = 0x12000, scoped, tag = 'internal scratch']
  #allocation2 [shape = 's32[1]{0}', space=sflag, size = 0x4, scoped, tag = 'scoped memory for tpu_custom_call.1']
  #allocation3 [shape = 's32[1]{0:T(128)S(6)}', space=smem, size = 0x200, scoped, tag = 'prefetched SMEM operand 0']
  #allocation4 [shape = 's32[1]{0:T(128)S(6)}', space=smem, size = 0x200, scoped, tag = 'prefetched SMEM operand 1']
  %s0 = inlined_call_operand.<no memory space> [shape: s32[1], index: 0, kind: input, shape index: {}]
  %s1 = inlined_call_operand.<no memory space> [shape: s32[1], index: 1, kind: input, shape index: {}]
  %s2 = inlined_call_operand.vmem [shape: s32[4,1], index: 2, kind: input, shape index: {}]
  %s3 = inlined_call_operand.vmem [shape: f32[1,448], index: 3, kind: input, shape index: {}]
  %s4 = inlined_call_operand.hbm [shape: f32[4,448], index: 4, kind: output, shape index: {}]
  %s5 = sld [smem:[#allocation0]]
  $region30: #{tpu_custom_call.1} parent=0
    _
  %s7 = ssub.s32 1, %s5
  %s8 = scalar_select 0, %s7, %s5
  %9 = sst [smem:[#allocation3]] %s0
  %10 = sst [smem:[#allocation4]] %s1
  $region1: #{tpu_custom_call.1} parent=0
    #allocation5 [shape = 'u8[8192]{0}', space=vmem, size = 0x2000, scoped, tag = 'output window, operand 0, single buffered']
    #allocation6 [shape = 's32[1]{0}', space=sflag, size = 0x4, scoped, tag = 'scoped memory for tpu_custom_call.1']
    %11 = vsyncpa [#allocation6], 0
    // Predicated region
    $region2: #{tpu_custom_call.1} parent=1 // pred_check
      _
    $region3: #{tpu_custom_call.1} parent=1 // pred_check_branch
      %13 = sbr.rel (0) target = $region5
    $region4: #{tpu_custom_call.1} parent=1 // pred_region
      _
    $region5: #{tpu_custom_call.1} parent=1 // pred_fallthru
      _
    // Predicated region
    $region6: #{tpu_custom_call.1} parent=1 // pred_check
      _
    $region7: #{tpu_custom_call.1} parent=1 // pred_check_branch
      %15 = sbr.rel (0) target = $region9
    $region8: #{tpu_custom_call.1} parent=1 // pred_region
      _
    $region9: #{tpu_custom_call.1} parent=1 // pred_fallthru
      _
    %s16 = smul.u32 0, 448
    %s17 = sld [smem:[#allocation3]]
    %s18 = sld [smem:[#allocation4]]
    %s19 = sadd.s32 %s16, 448
    %p20 = scmp.ge.s32.totalorder %s17, %s19
    %p21 = scmp.le.s32.totalorder %s18, %s16
    // Predicated region
    $region10: #{tpu_custom_call.1} parent=1 // pred_check
      %p22 = pneg %p20
    $region11: #{tpu_custom_call.1} parent=1 // pred_check_branch
      %24 = sbr.rel (%p22) target = $region13
    $region12: #{tpu_custom_call.1} parent=1 // pred_region
      %v25 = vld [vmem:[%s3] sm:$0xf]
      %v27 = vlaneseq
      %v28 = vshrl.u32 %v27, 7
      %v29 = vsub.s32 0, %v28
      %v30 = vrot.slane %v25, %v29
      %v31 = vlaneseq
      %v32 = vshrl.u32 %v31, 7
      %v33 = vsub.s32 1, %v32
      %v34 = vrot.slane %v25, %v33
      %v35 = vlaneseq
      %v36 = vshrl.u32 %v35, 7
      %v37 = vsub.s32 2, %v36
      %v38 = vrot.slane %v25, %v37
      %v39 = vlaneseq
      %v40 = vshrl.u32 %v39, 7
      %v41 = vsub.s32 3, %v40
      %v42 = vrot.slane %v25, %v41
      %v43 = vcombine.low %v30, %v34
      %v44 = vcombine.low %v38, %v42
      %47 = vst [vmem:[#allocation5] sm:$0xff] %v43
      %vm48 = vcmask 1043456
      %vm49 = vcmask 523268
      %vm50 = vmor %vm49, %vm48
      %51 = vst.msk [vmem:[#allocation5 + $0x8] sm:$0xff] %vm50, %v44
    $region13: #{tpu_custom_call.1} parent=1 // pred_fallthru
      _
    // Predicated region
    $region14: #{tpu_custom_call.1} parent=1 // pred_check
      %p52 = pneg %p21
    $region15: #{tpu_custom_call.1} parent=1 // pred_check_branch
      %54 = sbr.rel (%p52) target = $region17
    $region16: #{tpu_custom_call.1} parent=1 // pred_region
      %55 = vst [vmem:[#allocation5] sm:$0xff] 0.0
      %vm56 = vcmask 1043456
      %vm57 = vcmask 523268
      %vm58 = vmor %vm57, %vm56
      %59 = vst.msk [vmem:[#allocation5 + $0x8] sm:$0xff] %vm58, 0.0
    $region17: #{tpu_custom_call.1} parent=1 // pred_fallthru
      _
    %p60 = por %p20, %p21
    %p61 = pneg %p60
    // Predicated region
    $region18: #{tpu_custom_call.1} parent=1 // pred_check
      _
    $region19: #{tpu_custom_call.1} parent=1 // pred_check_branch
      %63 = sbr.rel (%p60) target = $region21
    $region20: #{tpu_custom_call.1} parent=1 // pred_region
      %v64 = vlaneseq
      %v65 = vand.u32 %v64, 127
      %v66 = vadd.s32 %v65, 128
      %v67 = vadd.s32 %v65, 256
      %v68 = vadd.s32 %v65, 384
      %v69 = vstv %s16
      %v70 = vadd.s32 %v65, %v69
      %v71 = vadd.s32 %v66, %v69
      %v72 = vadd.s32 %v67, %v69
      %v73 = vadd.s32 %v68, %v69
      %v74 = vld [vmem:[%s2] sm:$0xf]
      %75 = vset.pattern.permute.xlu0 0
      %76 = vperm.xlu0 %75, %v74
      %v77 = vpop.permute.xlu0 %76
      %vm78 = vcmp.lt.s32.totalorder %v70, %v77
      %vm79 = vcmp.lt.s32.totalorder %v71, %v77
      %vm80 = vcmp.lt.s32.totalorder %v72, %v77
      %vm81 = vcmp.lt.s32.totalorder %v73, %v77
      %v82 = vld [vmem:[%s3] sm:$0xf]
      %v84 = vlaneseq
      %v85 = vshrl.u32 %v84, 7
      %v86 = vsub.s32 0, %v85
      %v87 = vrot.slane %v82, %v86
      %v88 = vlaneseq
      %v89 = vshrl.u32 %v88, 7
      %v90 = vsub.s32 1, %v89
      %v91 = vrot.slane %v82, %v90
      %v92 = vlaneseq
      %v93 = vshrl.u32 %v92, 7
      %v94 = vsub.s32 2, %v93
      %v95 = vrot.slane %v82, %v94
      %v96 = vlaneseq
      %v97 = vshrl.u32 %v96, 7
      %v98 = vsub.s32 3, %v97
      %v99 = vrot.slane %v82, %v98
      %v104 = vsel %vm78, %v87, 0.0
      %v105 = vsel %vm79, %v91, 0.0
      %v106 = vsel %vm80, %v95, 0.0
      %v107 = vsel %vm81, %v99, 0.0
      %v112 = vcombine.low %v104, %v105
      %v113 = vcombine.low %v106, %v107
      %116 = vst [vmem:[#allocation5] sm:$0xff] %v112
      %vm117 = vcmask 1043456
      %vm118 = vcmask 523268
      %vm119 = vmor %vm118, %vm117
      %120 = vst.msk [vmem:[#allocation5 + $0x8] sm:$0xff] %vm119, %v113
    $region21: #{tpu_custom_call.1} parent=1 // pred_fallthru
      _
    // Predicated region
    $region22: #{tpu_custom_call.1} parent=1 // pred_check
      _
    $region23: #{tpu_custom_call.1} parent=1 // pred_check_branch
      %122 = sbr.rel (0) target = $region25
    $region24: #{tpu_custom_call.1} parent=1 // pred_region
      %s124 = ssub.s32 256, 256
      %125 = vsyncadd [#allocation6], %s124
      %s127 = sshll.u32 [#allocation5], 4
      %s128 = int_to_ptr.vmem [resolvable:$true] %s127
      %130 = dma.vmem_to_hbm [thread:$0]  %s128, 256, %s4, [#allocation6]
    $region25: #{tpu_custom_call.1} parent=1 // pred_fallthru
      _
    // Predicated region
    $region26: #{tpu_custom_call.1} parent=1 // pred_check
      _
    $region27: #{tpu_custom_call.1} parent=1 // pred_check_branch
      %132 = sbr.rel (0) target = $region29
    $region28: #{tpu_custom_call.1} parent=1 // pred_region
      %133 = dma.done [#allocation6], 256
    $region29: #{tpu_custom_call.1} parent=1 // pred_fallthru
      _
    %134 = vsyncpa [#allocation6], 1

</llo_original>
